<compile_context>
chip_gen: v5e
topology: v5e:2x2
jax: 0.10.0
libtpu: 0.0.40
codegen_flags: <defaults>
</compile_context>

<pallas_src>
import functools
import math

import jax
import jax.numpy as jnp
from jax.experimental import pallas as pl
from jax.experimental.pallas import tpu as pltpu

DEFAULT_VAL = 0.0


def _round_up(a: int, m: int) -> int:
    return ((a + m - 1) // m) * m


def _sublane_tile(dtype) -> int:
    """Minimum sublane multiple for the second-minor dim of a block."""
    itemsize = jnp.dtype(dtype).itemsize
    return {4: 8, 2: 16, 1: 32}.get(itemsize, 8)


def _domain_linear_kernel(x_ref, w_ref, b_ref, lo_ref, hi_ref, o_ref, *,
                          default_val: float):
    x = x_ref[...]                                               # [TM, Dx]
    # Inner module: Linear.  K (=Dx) is tiny; the kernel is HBM-bound, so the
    # MXU matmul is never on the critical path.
    out = jnp.dot(x, w_ref[...], preferred_element_type=jnp.float32)
    out = out + b_ref[...]                                       # [TM, Dout]
    # Domain mask: single fused cross-lane reduction (one XLU reduce).
    in_domain = jnp.all((x < hi_ref[...]) & (x > lo_ref[...]),
                        axis=-1, keepdims=True)                  # [TM, 1]
    o_ref[...] = jnp.where(in_domain, out,
                           jnp.float32(default_val)).astype(o_ref.dtype)


def module_on_prespecified_domain(x, w, b, x_range, *,
                                  default_val: float = DEFAULT_VAL,
                                  tm_max: int = 4096,
                                  min_grid_steps: int = 4):
    """x: [..., Dx]; w: [Dx, Dout]; b: [Dout]; x_range: [2, Dx]."""
    *lead, Dx = x.shape
    Dout = w.shape[1]
    M = math.prod(lead) if lead else 1

    if M == 0:  # degenerate empty batch
        return jnp.zeros((*lead, Dout), x.dtype)

    # ---- row-tile selection (no padding of M; ragged last block is masked) --
    sub = _sublane_tile(x.dtype)
    tm = min(
        _round_up(M, sub),                                     # never exceed M
        tm_max,                                                # VMEM cap
        max(_round_up(pl.cdiv(M, min_grid_steps), sub), sub),  # keep >=4 steps
    )
    grid = (pl.cdiv(M, tm),)

    x2 = x.reshape(M, Dx)
    b2 = b.reshape(1, Dout)
    lo = x_range[0].reshape(1, Dx).astype(x.dtype)
    hi = x_range[1].reshape(1, Dx).astype(x.dtype)

    out2 = pl.pallas_call(
        functools.partial(_domain_linear_kernel, default_val=default_val),
        out_shape=jax.ShapeDtypeStruct((M, Dout), x.dtype),
        grid=grid,
        in_specs=[
            pl.BlockSpec((tm, Dx), lambda i: (i, 0)),     # x tile (streamed)
            pl.BlockSpec((Dx, Dout), lambda i: (0, 0)),   # w (resident)
            pl.BlockSpec((1, Dout), lambda i: (0, 0)),    # b (resident)
            pl.BlockSpec((1, Dx), lambda i: (0, 0)),      # lo (resident)
            pl.BlockSpec((1, Dx), lambda i: (0, 0)),      # hi (resident)
        ],
        out_specs=pl.BlockSpec((tm, Dout), lambda i: (i, 0)),
        compiler_params=pltpu.CompilerParams(
            dimension_semantics=("parallel",)),
    )(x2, w, b2, lo, hi)

    return out2.reshape(*lead, Dout)


def _reference(x, w, b, x_range, default_val=DEFAULT_VAL):
    out = jnp.matmul(x, w) + b
    in_domain = (jnp.all(x < x_range[1], axis=-1)
                 & jnp.all(x > x_range[0], axis=-1))
    return jnp.where(in_domain[..., None], out,
                     jnp.full_like(out, default_val))


if __name__ == "__main__":
    key = jax.random.PRNGKey(0)

    # --- case 1: nominal small shapes ---------------------------------------
    B, N, Dx, Dout = 2, 8, 4, 32
    kx, kw, kb, key = jax.random.split(key, 4)
    x = jax.random.uniform(kx, (B, N, Dx), jnp.float32, minval=-2.0, maxval=2.0)
    w = jax.random.normal(kw, (Dx, Dout), jnp.float32) * 0.1
    b = jax.random.normal(kb, (Dout,), jnp.float32) * 0.1
    x_range = jnp.stack([jnp.full((Dx,), -1.0, jnp.float32),
                         jnp.full((Dx,), 1.0, jnp.float32)], axis=0)

    out = jax.block_until_ready(module_on_prespecified_domain(x, w, b, x_range))
    ref = _reference(x, w, b, x_range)
    assert out.shape == (B, N, Dout)
    assert jnp.allclose(out, ref, atol=1e-5, rtol=1e-5)

    # --- case 2: ragged M (boundary-masked last block), Dout not pow2 --------
    B2, N2, Dx2, Dout2 = 3, 7, 4, 20
    kx, kw, kb, key = jax.random.split(key, 4)
    x2 = jax.random.uniform(kx, (B2, N2, Dx2), jnp.float32,
                            minval=-2.0, maxval=2.0)
    w2 = jax.random.normal(kw, (Dx2, Dout2), jnp.float32) * 0.1
    b2 = jax.random.normal(kb, (Dout2,), jnp.float32) * 0.1
    x_range2 = jnp.stack([jnp.full((Dx2,), -1.0, jnp.float32),
                          jnp.full((Dx2,), 1.0, jnp.float32)], axis=0)

    out2 = jax.block_until_ready(
        module_on_prespecified_domain(x2, w2, b2, x_range2))
    ref2 = _reference(x2, w2, b2, x_range2)
    assert out2.shape == (B2, N2, Dout2)
    assert jnp.allclose(out2, ref2, atol=1e-5, rtol=1e-5)

    print("KERNEL_OK")
</pallas_src>

<mosaic_0001>
module attributes {stable_mosaic.version = 11 : i64} {
  func.func @_domain_linear_kernel(%arg0: i32, %arg1: memref<8x4xf32, #tpu.memory_space<vmem>>, %arg2: memref<4x32xf32, #tpu.memory_space<vmem>>, %arg3: memref<1x32xf32, #tpu.memory_space<vmem>>, %arg4: memref<1x4xf32, #tpu.memory_space<vmem>>, %arg5: memref<1x4xf32, #tpu.memory_space<vmem>>, %arg6: memref<8x32xf32, #tpu.memory_space<vmem>>) attributes {dimension_semantics = [#tpu.dimension_semantics<parallel>], iteration_bounds = array<i64: 2>, scalar_prefetch = 0 : i64, scratch_operands = 0 : i64, tpu.core_type = #tpu.core_type<tc>, window_params = [{transform_indices = @transform_0, window_bounds = array<i64: 8, 4>}, {pipeline_mode = #tpu.pipeline_mode<synchronous>, transform_indices = @transform_1, window_bounds = array<i64: 4, 32>}, {pipeline_mode = #tpu.pipeline_mode<synchronous>, transform_indices = @transform_2, window_bounds = array<i64: 1, 32>}, {pipeline_mode = #tpu.pipeline_mode<synchronous>, transform_indices = @transform_3, window_bounds = array<i64: 1, 4>}, {pipeline_mode = #tpu.pipeline_mode<synchronous>, transform_indices = @transform_4, window_bounds = array<i64: 1, 4>}, {transform_indices = @transform_5, window_bounds = array<i64: 8, 32>}]} {
    %c0 = arith.constant 0 : index
    %c0_0 = arith.constant 0 : index
    %0 = vector.load %arg1[%c0, %c0_0] : memref<8x4xf32, #tpu.memory_space<vmem>>, vector<8x4xf32>
    %c0_1 = arith.constant 0 : index
    %c0_2 = arith.constant 0 : index
    %1 = vector.load %arg2[%c0_1, %c0_2] : memref<4x32xf32, #tpu.memory_space<vmem>>, vector<4x32xf32>
    %cst = arith.constant dense<0.000000e+00> : vector<8x32xf32>
    %2 = tpu.matmul %0, %1, %cst {dimension_numbers = #tpu.dot_dimension_numbers<[1], [0], [0], [1], [0, 0, 1, 1], [], []>} : vector<8x4xf32>, vector<4x32xf32>, vector<8x32xf32> -> vector<8x32xf32>
    %c0_3 = arith.constant 0 : index
    %c0_4 = arith.constant 0 : index
    %3 = vector.load %arg3[%c0_3, %c0_4] : memref<1x32xf32, #tpu.memory_space<vmem>>, vector<1x32xf32>
    %4 = vector.broadcast %3 : vector<1x32xf32> to vector<8x32xf32>
    %5 = arith.addf %2, %4 : vector<8x32xf32>
    %c0_5 = arith.constant 0 : index
    %c0_6 = arith.constant 0 : index
    %6 = vector.load %arg5[%c0_5, %c0_6] : memref<1x4xf32, #tpu.memory_space<vmem>>, vector<1x4xf32>
    %7 = vector.broadcast %6 : vector<1x4xf32> to vector<8x4xf32>
    %8 = arith.cmpf olt, %0, %7 : vector<8x4xf32>
    %c0_7 = arith.constant 0 : index
    %c0_8 = arith.constant 0 : index
    %9 = vector.load %arg4[%c0_7, %c0_8] : memref<1x4xf32, #tpu.memory_space<vmem>>, vector<1x4xf32>
    %10 = vector.broadcast %9 : vector<1x4xf32> to vector<8x4xf32>
    %11 = arith.cmpf ogt, %0, %10 : vector<8x4xf32>
    %12 = arith.andi %8, %11 : vector<8x4xi1>
    %cst_9 = arith.constant 1.000000e+00 : f32
    %cst_10 = arith.constant 0.000000e+00 : f32
    %13 = vector.broadcast %cst_9 : f32 to vector<8x4xf32>
    %14 = vector.broadcast %cst_10 : f32 to vector<8x4xf32>
    %15 = arith.select %12, %13, %14 : vector<8x4xi1>, vector<8x4xf32>
    %cst_11 = arith.constant dense<0x7F800000> : vector<8xf32>
    %16 = vector.multi_reduction <minimumf>, %15, %cst_11 [1] : vector<8x4xf32> to vector<8xf32>
    %cst_12 = arith.constant 0.000000e+00 : f32
    %17 = vector.broadcast %cst_12 : f32 to vector<8xf32>
    %18 = arith.cmpf ogt, %16, %17 : vector<8xf32>
    %19 = vector.shape_cast %18 : vector<8xi1> to vector<8x1xi1>
    %cst_13 = arith.constant 0.000000e+00 : f32
    %20 = vector.shape_cast %19 : vector<8x1xi1> to vector<8x1xi1>
    %21 = vector.broadcast %20 : vector<8x1xi1> to vector<8x32xi1>
    %22 = vector.broadcast %cst_13 : f32 to vector<8x32xf32>
    %23 = arith.select %21, %5, %22 : vector<8x32xi1>, vector<8x32xf32>
    %c0_14 = arith.constant 0 : index
    %c0_15 = arith.constant 0 : index
    %24 = vector.load %arg6[%c0_14, %c0_15] : memref<8x32xf32, #tpu.memory_space<vmem>>, vector<8x32xf32>
    tpu.vector_store %arg6[%c0_14, %c0_15], %23 {strides = array<i32>} : memref<8x32xf32, #tpu.memory_space<vmem>>, vector<8x32xf32>,
    return
  }
  func.func @transform_0(%arg0: i32) -> (i32, i32) {
    %c0_i32 = arith.constant 0 : i32
    %c0_i32_0 = arith.constant 0 : i32
    return %arg0, %c0_i32 : i32, i32
  }
  func.func @transform_1(%arg0: i32) -> (i32, i32) {
    %c0_i32 = arith.constant 0 : i32
    %c0_i32_0 = arith.constant 0 : i32
    %c0_i32_1 = arith.constant 0 : i32
    return %c0_i32, %c0_i32_0 : i32, i32
  }
  func.func @transform_2(%arg0: i32) -> (i32, i32) {
    %c0_i32 = arith.constant 0 : i32
    %c0_i32_0 = arith.constant 0 : i32
    %c0_i32_1 = arith.constant 0 : i32
    return %c0_i32, %c0_i32_0 : i32, i32
  }
  func.func @transform_3(%arg0: i32) -> (i32, i32) {
    %c0_i32 = arith.constant 0 : i32
    %c0_i32_0 = arith.constant 0 : i32
    %c0_i32_1 = arith.constant 0 : i32
    return %c0_i32, %c0_i32_0 : i32, i32
  }
  func.func @transform_4(%arg0: i32) -> (i32, i32) {
    %c0_i32 = arith.constant 0 : i32
    %c0_i32_0 = arith.constant 0 : i32
    %c0_i32_1 = arith.constant 0 : i32
    return %c0_i32, %c0_i32_0 : i32, i32
  }
  func.func @transform_5(%arg0: i32) -> (i32, i32) {
    %c0_i32 = arith.constant 0 : i32
    %c0_i32_0 = arith.constant 0 : i32
    return %arg0, %c0_i32 : i32, i32
  }
}

</mosaic_0001>

<llo_original>
// kernel: tpu_custom_call.1
$region0: #{tpu_custom_call.1}
  #allocation0 [shape = 'u32[]', space=smem, size = 0x4, offset = 0x4, fixed_abs, tag = 'smem constant byte address 0x4 - core index']
  #allocation1 [shape = 'u32[72,128]{1,0:T(1,128)}', space=vmem, size = 0x9000, scoped, tag = 'internal scratch']
  %s0 = inlined_call_operand.vmem [shape: f32[16,4], index: 0, kind: input, shape index: {}]
  %s1 = inlined_call_operand.vmem [shape: f32[4,32], index: 1, kind: input, shape index: {}]
  %s2 = inlined_call_operand.vmem [shape: f32[1,32], index: 2, kind: input, shape index: {}]
  %s3 = inlined_call_operand.vmem [shape: f32[1,4], index: 3, kind: input, shape index: {}]
  %s4 = inlined_call_operand.vmem [shape: f32[1,4], index: 4, kind: input, shape index: {}]
  %s5 = inlined_call_operand.hbm [shape: f32[16,32], index: 5, kind: output, shape index: {}]
  %s6 = sld [smem:[#allocation0]]
  $region53: #{tpu_custom_call.1} parent=0
    _
  %s8 = ssub.s32 1, %s6
  %s9 = scalar_select 0, %s8, %s6
  $region1: #{tpu_custom_call.1} parent=0
    #allocation2 [shape = 'u8[8192]{0}', space=vmem, size = 0x2000, scoped, tag = 'output window, operand 0']
    #allocation3 [shape = 's32[2]{0}', space=sflag, size = 0x8, scoped, tag = 'scoped memory for tpu_custom_call.1']
    %10 = vsyncpa [#allocation3], 0
    %s11 = scalar_lea.sflag [#allocation3], 1
    %12 = vsyncpa %s11, 0
    loop: start=0, step=1, limit=4
    $region2: #{tpu_custom_call.1} parent=1 // loop_pre_header
      _
    $region3: #{tpu_custom_call.1} parent=1 // loop_header
      %s14 = sphi 0, %s18
      %p15 = scmp.ge.s32.totalorder %s14, 4
      %s24 = sphi 0, %s26
      %s27 = sphi 0, %s24
      %s28 = sphi 0, %s27
      %s44 = sphi 0, %s28
      %s48 = sphi 0, %s48
      %s50 = sphi 0, %s48
      %s51 = sphi 0, %s50
      %s65 = sphi 0, %s51
      %s69 = sphi 0, %s69
      %s71 = sphi 0, %s69
      %s72 = sphi 0, %s71
      %s86 = sphi 0, %s72
      %s90 = sphi 0, %s90
      %s92 = sphi 0, %s90
      %s93 = sphi 0, %s92
      %s107 = sphi 0, %s93
      %s111 = sphi 0, %s111
      %s113 = sphi 0, %s111
      %s114 = sphi 0, %s113
      %s128 = sphi 0, %s114
      %s134 = sphi 0, %s136
      %s137 = sphi 0, %s134
      %s138 = sphi 0, %s137
      %s154 = sphi 0, %s138
    $region4: #{tpu_custom_call.1} parent=1 // loop_header_branch
      %17 = sbr.rel (%p15) target = $region8
    $region5: #{tpu_custom_call.1} parent=1 // loop_body
      %s19 = ssub.s32 %s14, 1
      %s20 = ssub.s32 %s14, 2
      %s21 = sadd.s32 %s14, 1
      %s22 = ssub.s32 %s14, %s21
      %p23 = scmp.eq.s32.totalorder %s22, 0
      %s25 = sadd.s32 %s24, 1
      %s26 = scalar_select %p23, %s24, %s25
      %p29 = pneg %p23
      %p30 = scmp.eq.s32.totalorder %s14, 1
      %p31 = por %p29, %p30
      %p32 = scmp.ne.s32.totalorder %s24, %s27
      %p33 = scmp.eq.s32.totalorder %s14, 0
      %p34 = por %p32, %p33
      %p35 = scmp.ne.s32.totalorder %s24, %s27
      %p36 = scmp.eq.s32.totalorder %s19, 1
      %p37 = por %p35, %p36
      %p38 = scmp.ne.s32.totalorder %s27, %s28
      %p39 = scmp.eq.s32.totalorder %s19, 0
      %p40 = por %p38, %p39
      %p41 = scmp.ne.s32.totalorder %s27, %s28
      %p42 = scmp.eq.s32.totalorder %s20, 1
      %p43 = por %p41, %p42
      %p45 = scmp.ne.s32.totalorder %s28, %s44
      %p46 = scmp.eq.s32.totalorder %s20, 0
      %p47 = por %p45, %p46
      %s49 = sadd.s32 %s48, 1
      %p52 = scmp.eq.s32.totalorder %s14, 1
      %p53 = scmp.ne.s32.totalorder %s48, %s50
      %p54 = scmp.eq.s32.totalorder %s14, 0
      %p55 = por %p53, %p54
      %p56 = scmp.ne.s32.totalorder %s48, %s50
      %p57 = scmp.eq.s32.totalorder %s19, 1
      %p58 = por %p56, %p57
      %p59 = scmp.ne.s32.totalorder %s50, %s51
      %p60 = scmp.eq.s32.totalorder %s19, 0
      %p61 = por %p59, %p60
      %p62 = scmp.ne.s32.totalorder %s50, %s51
      %p63 = scmp.eq.s32.totalorder %s20, 1
      %p64 = por %p62, %p63
      %p66 = scmp.ne.s32.totalorder %s51, %s65
      %p67 = scmp.eq.s32.totalorder %s20, 0
      %p68 = por %p66, %p67
      %s70 = sadd.s32 %s69, 1
      %p73 = scmp.eq.s32.totalorder %s14, 1
      %p74 = scmp.ne.s32.totalorder %s69, %s71
      %p75 = scmp.eq.s32.totalorder %s14, 0
      %p76 = por %p74, %p75
      %p77 = scmp.ne.s32.totalorder %s69, %s71
      %p78 = scmp.eq.s32.totalorder %s19, 1
      %p79 = por %p77, %p78
      %p80 = scmp.ne.s32.totalorder %s71, %s72
      %p81 = scmp.eq.s32.totalorder %s19, 0
      %p82 = por %p80, %p81
      %p83 = scmp.ne.s32.totalorder %s71, %s72
      %p84 = scmp.eq.s32.totalorder %s20, 1
      %p85 = por %p83, %p84
      %p87 = scmp.ne.s32.totalorder %s72, %s86
      %p88 = scmp.eq.s32.totalorder %s20, 0
      %p89 = por %p87, %p88
      %s91 = sadd.s32 %s90, 1
      %p94 = scmp.eq.s32.totalorder %s14, 1
      %p95 = scmp.ne.s32.totalorder %s90, %s92
      %p96 = scmp.eq.s32.totalorder %s14, 0
      %p97 = por %p95, %p96
      %p98 = scmp.ne.s32.totalorder %s90, %s92
      %p99 = scmp.eq.s32.totalorder %s19, 1
      %p100 = por %p98, %p99
      %p101 = scmp.ne.s32.totalorder %s92, %s93
      %p102 = scmp.eq.s32.totalorder %s19, 0
      %p103 = por %p101, %p102
      %p104 = scmp.ne.s32.totalorder %s92, %s93
      %p105 = scmp.eq.s32.totalorder %s20, 1
      %p106 = por %p104, %p105
      %p108 = scmp.ne.s32.totalorder %s93, %s107
      %p109 = scmp.eq.s32.totalorder %s20, 0
      %p110 = por %p108, %p109
      %s112 = sadd.s32 %s111, 1
      %p115 = scmp.eq.s32.totalorder %s14, 1
      %p116 = scmp.ne.s32.totalorder %s111, %s113
      %p117 = scmp.eq.s32.totalorder %s14, 0
      %p118 = por %p116, %p117
      %p119 = scmp.ne.s32.totalorder %s111, %s113
      %p120 = scmp.eq.s32.totalorder %s19, 1
      %p121 = por %p119, %p120
      %p122 = scmp.ne.s32.totalorder %s113, %s114
      %p123 = scmp.eq.s32.totalorder %s19, 0
      %p124 = por %p122, %p123
      %p125 = scmp.ne.s32.totalorder %s113, %s114
      %p126 = scmp.eq.s32.totalorder %s20, 1
      %p127 = por %p125, %p126
      %p129 = scmp.ne.s32.totalorder %s114, %s128
      %p130 = scmp.eq.s32.totalorder %s20, 0
      %p131 = por %p129, %p130
      %s132 = ssub.s32 %s14, %s21
      %p133 = scmp.eq.s32.totalorder %s132, 0
      %s135 = sadd.s32 %s134, 1
      %s136 = scalar_select %p133, %s134, %s135
      %p139 = pneg %p133
      %p140 = scmp.eq.s32.totalorder %s14, 1
      %p141 = por %p139, %p140
      %p142 = scmp.ne.s32.totalorder %s134, %s137
      %p143 = scmp.eq.s32.totalorder %s14, 0
      %p144 = por %p142, %p143
      %p145 = scmp.ne.s32.totalorder %s134, %s137
      %p146 = scmp.eq.s32.totalorder %s19, 1
      %p147 = por %p145, %p146
      %p148 = scmp.ne.s32.totalorder %s137, %s138
      %p149 = scmp.eq.s32.totalorder %s19, 0
      %p150 = por %p148, %p149
      %p151 = scmp.ne.s32.totalorder %s137, %s138
      %p152 = scmp.eq.s32.totalorder %s20, 1
      %p153 = por %p151, %p152
      %p155 = scmp.ne.s32.totalorder %s138, %s154
      %p156 = scmp.eq.s32.totalorder %s20, 0
      %p157 = por %p155, %p156
      %p158 = scmp.le.s32.totalorder 1, %s14
      %p159 = scmp.lt.s32.totalorder %s14, 3
      %p160 = pnand %p158, %p159
      %p161 = pneg %p160
      // Predicated region
      $region9: #{tpu_custom_call.1} parent=5 // pred_check
        _
      $region10: #{tpu_custom_call.1} parent=5 // pred_check_branch
        %163 = sbr.rel (%p160) target = $region12
      $region11: #{tpu_custom_call.1} parent=5 // pred_region
        %s164 = ssub.s32 %s14, 1
        // Predicated region
        $region13: #{tpu_custom_call.1} parent=11 // pred_check
          %p165 = pneg %p61
        $region14: #{tpu_custom_call.1} parent=11 // pred_check_branch
          %167 = sbr.rel (%p165) target = $region16
        $region15: #{tpu_custom_call.1} parent=11 // pred_region
          _
        $region16: #{tpu_custom_call.1} parent=11 // pred_fallthru
          _
        // Predicated region
        $region17: #{tpu_custom_call.1} parent=11 // pred_check
          %p168 = pneg %p82
        $region18: #{tpu_custom_call.1} parent=11 // pred_check_branch
          %170 = sbr.rel (%p168) target = $region20
        $region19: #{tpu_custom_call.1} parent=11 // pred_region
          _
        $region20: #{tpu_custom_call.1} parent=11 // pred_fallthru
          _
        // Predicated region
        $region21: #{tpu_custom_call.1} parent=11 // pred_check
          %p171 = pneg %p103
        $region22: #{tpu_custom_call.1} parent=11 // pred_check_branch
          %173 = sbr.rel (%p171) target = $region24
        $region23: #{tpu_custom_call.1} parent=11 // pred_region
          _
        $region24: #{tpu_custom_call.1} parent=11 // pred_fallthru
          _
        // Predicated region
        $region25: #{tpu_custom_call.1} parent=11 // pred_check
          %p174 = pneg %p124
        $region26: #{tpu_custom_call.1} parent=11 // pred_check_branch
          %176 = sbr.rel (%p174) target = $region28
        $region27: #{tpu_custom_call.1} parent=11 // pred_region
          _
        $region28: #{tpu_custom_call.1} parent=11 // pred_fallthru
          _
      $region12: #{tpu_custom_call.1} parent=5 // pred_fallthru
        _
      %p177 = scmp.lt.s32.totalorder %s14, 2
      // Predicated region
      $region29: #{tpu_custom_call.1} parent=5 // pred_check
        %p178 = pneg %p177
      $region30: #{tpu_custom_call.1} parent=5 // pred_check_branch
        %180 = sbr.rel (%p178) target = $region32
      $region31: #{tpu_custom_call.1} parent=5 // pred_region
        // Predicated region
        $region33: #{tpu_custom_call.1} parent=31 // pred_check
          %p181 = pneg %p34
        $region34: #{tpu_custom_call.1} parent=31 // pred_check_branch
          %183 = sbr.rel (%p181) target = $region36
        $region35: #{tpu_custom_call.1} parent=31 // pred_region
          %p184 = scmp.lt.s32.totalorder %s14, 1
          %s185 = scalar_select %p184, %s14, 1
          %s186 = smul.addr %s185, 8
          %s187 = scalar_lea.vmem %s0, %s186
        $region36: #{tpu_custom_call.1} parent=31 // pred_fallthru
          _
      $region32: #{tpu_custom_call.1} parent=5 // pred_fallthru
        _
      %p188 = scmp.le.s32.totalorder 1, %s14
      %p189 = scmp.lt.s32.totalorder %s14, 3
      %p190 = pnand %p188, %p189
      %p191 = pneg %p190
      // Predicated region
      $region37: #{tpu_custom_call.1} parent=5 // pred_check
        _
      $region38: #{tpu_custom_call.1} parent=5 // pred_check_branch
        %193 = sbr.rel (%p190) target = $region40
      $region39: #{tpu_custom_call.1} parent=5 // pred_region
        %s194 = ssub.s32 %s14, 1
        %p195 = scmp.lt.s32.totalorder %s19, 1
        %s196 = scalar_select %p195, %s19, 1
        %s197 = smul.addr %s196, 8
        %s198 = scalar_lea.vmem %s0, %s197
        %p199 = pneg %p40
        %p200 = pneg %p37
        %p201 = pneg %p61
        %p202 = pneg %p58
        %p203 = pneg %p82
        %p204 = pneg %p79
        %p205 = pneg %p103
        %p206 = pneg %p100
        %p207 = pneg %p124
        %p208 = pneg %p121
        %p209 = pneg %p150
        %p210 = pneg %p147
        %s211 = sand.u32 %s137, 1
        %s212 = scalar_lea.sflag [#allocation3], %s211
        %s213 = sand.u32 %s137, 1
        %s214 = smul.addr %s213, 8
        %s215 = scalar_lea.vmem [#allocation2], %s214
        %p216 = scmp.lt.s32.totalorder %s19, 1
        %s217 = scalar_select %p216, %s19, 1
        %s218 = smul.addr %s217, 8
        %s219 = scalar_lea.vmem %s0, %s218
        %v220 = vld [vmem:[%s219] sm:$0xff]
        %v221 = vld [vmem:[%s1] sm:$0xf]
        %v222 = vld [vmem:[%s2] sm:$0x1]
        %v224 = vperm.slane %v222, 0
        %vm226 = vcmask 31744
        %v228 = vsel %vm226, %v220, 0
        %vm230 = vcmask 1043456
        %v232 = vsel %vm230, %v221, 0
        %234 = vmatpush.msra.mxu0 0.0
        %235 = vmatpush.msra.mxu0 0.0
        %236 = vmatpush.msra.mxu0 0.0
        %237 = vmatpush.msra.mxu0 0.0
        %238 = vmatpush.msra.mxu0 0.0
        %239 = vmatpush.msra.mxu0 0.0
        %240 = vmatpush.msra.mxu0 0.0
        %241 = vmatpush.msra.mxu0 0.0
        %242 = vmatpush.msra.mxu0 0.0
        %243 = vmatpush.msra.mxu0 0.0
        %244 = vmatpush.msra.mxu0 0.0
        %245 = vmatpush.msra.mxu0 0.0
        %246 = vmatpush.msra.mxu0 0.0
        %247 = vmatpush.msra.mxu0 0.0
        %248 = vmatpush.msra.mxu0 0.0
        %249 = vmatpush.msra.mxu0 %v232
        %250 = vmatmul.f32.gmra.mxu0 %v228
        %v251 = vpop.f32.mrf.mxu0
        %v252 = vadd.f32 %v224, %v251
        %253 = vdwg.mxu0
        %v254 = vld [vmem:[%s4] sm:$0x1]
        %v256 = vperm.slane %v254, 0
        %vm258 = vcmp.lt.f32.partialorder %v220, %v256
        %v259 = vld [vmem:[%s3] sm:$0x1]
        %v261 = vperm.slane %v259, 0
        %vm263 = vcmp.gt.f32.partialorder %v220, %v261
        %vm264 = vmand %vm258, %vm263
        %v265 = vsel %vm264, 1.0, 0.0
        %v266 = vsel %vm226, %v265, inf
        %267 = vmin.xlane.f32.xlu0 %v266
        %v268 = vpop.xlane.xlu0 %267
        %vm269 = vcmp.gt.f32.partialorder %v268, 0.0
        %v270 = vsel %vm269, 1, 0
        %vm271 = vcmp.eq.s32.totalorder %v270, 1
        %v272 = vsel %vm271, %v252, 0.0
        %vm273 = vcmask 261120
        %274 = vst.msk [vmem:[%s215] sm:$0xff] %vm273, %v272
        %s275 = sand.u32 %s137, 1
        %s276 = scalar_lea.sflag [#allocation3], %s275
        %s277 = sand.u32 %s137, 1
        %s278 = smul.addr %s277, 8
        %s279 = scalar_lea.vmem [#allocation2], %s278
        // Predicated region
        $region41: #{tpu_custom_call.1} parent=39 // pred_check
          %p280 = pneg %p147
        $region42: #{tpu_custom_call.1} parent=39 // pred_check_branch
          %282 = sbr.rel (%p280) target = $region44
        $region43: #{tpu_custom_call.1} parent=39 // pred_region
          %284 = vsyncadd %s276, 0
          %s285 = smul.addr %s19, 8
          %s286 = scalar_lea.hbm %s5, %s285
          %s288 = sshll.u32 %s279, 4
          %s289 = int_to_ptr.vmem [resolvable:$true] %s288
          %s290 = sshll.u32 %s286, 4
          %s291 = int_to_ptr.hbm [resolvable:$true] %s290
          %293 = dma.vmem_to_hbm [thread:$0]  %s289, 128, %s291, %s276
        $region44: #{tpu_custom_call.1} parent=39 // pred_fallthru
          _
      $region40: #{tpu_custom_call.1} parent=5 // pred_fallthru
        _
      %p294 = scmp.le.s32.totalorder 2, %s14
      // Predicated region
      $region45: #{tpu_custom_call.1} parent=5 // pred_check
        %p295 = pneg %p294
      $region46: #{tpu_custom_call.1} parent=5 // pred_check_branch
        %297 = sbr.rel (%p295) target = $region48
      $region47: #{tpu_custom_call.1} parent=5 // pred_region
        %s298 = ssub.s32 %s14, 2
        // Predicated region
        $region49: #{tpu_custom_call.1} parent=47 // pred_check
          %p299 = pneg %p153
        $region50: #{tpu_custom_call.1} parent=47 // pred_check_branch
          %301 = sbr.rel (%p299) target = $region52
        $region51: #{tpu_custom_call.1} parent=47 // pred_region
          %s302 = sand.u32 %s138, 1
          %s303 = scalar_lea.sflag [#allocation3], %s302
          %s304 = sand.u32 %s138, 1
          %s305 = smul.addr %s304, 8
          %s306 = scalar_lea.vmem [#allocation2], %s305
          %308 = dma.done %s303, 128
        $region52: #{tpu_custom_call.1} parent=47 // pred_fallthru
          _
      $region48: #{tpu_custom_call.1} parent=5 // pred_fallthru
        _
    $region6: #{tpu_custom_call.1} parent=1 // loop_footer
      %s18 = sadd.s32 1, %s14
    $region7: #{tpu_custom_call.1} parent=1 // loop_footer_branch
      %13 = sbr.rel target = $region3
    $region8: #{tpu_custom_call.1} parent=1 // loop_exit
      _
    %309 = vsyncpa [#allocation3], 1
    %s310 = scalar_lea.sflag [#allocation3], 1
    %311 = vsyncpa %s310, 1

</llo_original>
